<compile_context>
chip_gen: v6e
topology: v6e:2x2x1
jax: 0.10.0
libtpu: 0.0.40
codegen_flags: <defaults>
</compile_context>

<pallas_src>
import numpy as np

import jax
import jax.numpy as jnp
from jax.experimental import pallas as pl
from jax.experimental.pallas import tpu as pltpu


# -----------------------------------------------------------------------------
# Exact semantic match of DummyModule.forward: it must never run.
# -----------------------------------------------------------------------------
def dummy_forward(x: jax.Array) -> jax.Array:
    raise RuntimeError("This model should never be run")
    # TODO(synk): unreachable by construction, mirroring the torch module.


# -----------------------------------------------------------------------------
# Degenerate identity kernel (the only "compute" a parameter-free, never-run
# module could possibly have).
# -----------------------------------------------------------------------------
def _identity_kernel(x_ref, o_ref):
    # Plain vld -> vst on an (8,128)-aligned block; a pure copy is memory /
    # store-slot bound on all of v5e/v6e/v7x, so nothing fancier helps.
    o_ref[...] = x_ref[...]


def identity_pallas(x: jax.Array) -> jax.Array:
    """In-place-aliased, tiled, lane-dense identity copy through Pallas."""
    orig_shape = x.shape
    n = int(np.prod(orig_shape)) if orig_shape else 1

    # Lane-dense 2-D layout: last dim a multiple of 128 so stores are
    # unmasked `vst` (masked vst.msk partial stores cost up to ~4.5x).
    if n % 512 == 0:
        cols = 512
    elif n % 128 == 0:
        cols = 128
    else:
        # No lane-dense layout available; the "best kernel" for an identity
        # is no kernel at all.
        return x

    rows = n // cols
    x2 = x.reshape(rows, cols)

    # Row tile: big enough to amortize the ~0.35 us/step grid overhead and
    # stay near the HBM roofline, small enough that double-buffered (in+out)
    # blocks stay far under v7x's 64 MiB VMEM.  Must divide `rows` and keep
    # the (8,128) sublane/lane constraint (or be the full dim).
    if rows >= 8 and rows % 8 == 0:
        row_tile = 512
        while rows % row_tile != 0:
            row_tile //= 2  # terminates at >= 8 because rows % 8 == 0
    else:
        row_tile = rows  # full-extent block satisfies the constraint

    grid = (rows // row_tile,)

    y2 = pl.pallas_call(
        _identity_kernel,
        out_shape=jax.ShapeDtypeStruct((rows, cols), x2.dtype),
        grid=grid,
        in_specs=[pl.BlockSpec((row_tile, cols), lambda i: (i, 0))],
        out_specs=pl.BlockSpec((row_tile, cols), lambda i: (i, 0)),
        # Alias the (only) input to the output: no separate output buffer,
        # the copy writes back in place.
        input_output_aliases={0: 0},
        compiler_params=pltpu.CompilerParams(
            # Shard the copy grid across TensorCores on v7x; a no-op on
            # single-TC v5e/v6e.
            dimension_semantics=("parallel",),
            # Explicit, portable VMEM budget (well under v7x's 64 MiB
            # physical / 32 MiB default scoped limit).
            vmem_limit_bytes=32 * 1024 * 1024,
        ),
    )(x2)

    return y2.reshape(orig_shape)


if __name__ == "__main__":
    key = jax.random.PRNGKey(0)
    # Small shape consistent with an "any tensor" forward signature.
    # 2*4*16*32 = 4096 elements -> flattens to a lane-dense (8, 512) layout.
    x = jax.random.normal(key, (2, 4, 16, 32), dtype=jnp.float32)

    # Snapshot to host BEFORE the aliased call (input buffer may be donated).
    x_host = np.asarray(jax.device_get(x))

    # 1) Verify forward semantics: it raises exactly like the torch module.
    raised = False
    try:
        dummy_forward(x)
    except RuntimeError as e:
        raised = str(e) == "This model should never be run"
    assert raised, "DummyModule forward semantics not reproduced"

    # 2) Run the degenerate identity Pallas kernel once and block on it.
    y = identity_pallas(x)
    y = jax.block_until_ready(y)
    assert y.shape == x.shape and y.dtype == x.dtype
    assert np.allclose(np.asarray(jax.device_get(y)), x_host)

    print("KERNEL_OK")
</pallas_src>

<mosaic_0001>
module attributes {stable_mosaic.version = 11 : i64} {
  func.func @_identity_kernel(%arg0: i32, %arg1: memref<8x512xf32, #tpu.memory_space<vmem>>, %arg2: memref<8x512xf32, #tpu.memory_space<vmem>>) attributes {dimension_semantics = [#tpu.dimension_semantics<parallel>], iteration_bounds = array<i64: 1>, scalar_prefetch = 0 : i64, scratch_operands = 0 : i64, tpu.core_type = #tpu.core_type<tc>, window_params = [{transform_indices = @transform_0, window_bounds = array<i64: 8, 512>}, {transform_indices = @transform_1, window_bounds = array<i64: 8, 512>}]} {
    %c0 = arith.constant 0 : index
    %c0_0 = arith.constant 0 : index
    %0 = vector.load %arg1[%c0, %c0_0] : memref<8x512xf32, #tpu.memory_space<vmem>>, vector<8x512xf32>
    %c0_1 = arith.constant 0 : index
    %c0_2 = arith.constant 0 : index
    %1 = vector.load %arg2[%c0_1, %c0_2] : memref<8x512xf32, #tpu.memory_space<vmem>>, vector<8x512xf32>
    tpu.vector_store %arg2[%c0_1, %c0_2], %0 {strides = array<i32>} : memref<8x512xf32, #tpu.memory_space<vmem>>, vector<8x512xf32>,
    return
  }
  func.func @transform_0(%arg0: i32) -> (i32, i32) {
    %c0_i32 = arith.constant 0 : i32
    %c0_i32_0 = arith.constant 0 : i32
    return %arg0, %c0_i32 : i32, i32
  }
  func.func @transform_1(%arg0: i32) -> (i32, i32) {
    %c0_i32 = arith.constant 0 : i32
    %c0_i32_0 = arith.constant 0 : i32
    return %arg0, %c0_i32 : i32, i32
  }
}

</mosaic_0001>

<llo_original>
// kernel: tpu_custom_call.1
$region0: #{tpu_custom_call.1}
  #allocation0 [shape = 'u32[]', space=smem, size = 0x4, offset = 0x4, fixed_abs, tag = 'smem constant byte address 0x4 - core index']
  #allocation1 [shape = 'u32[144,128]{1,0:T(1,128)}', space=vmem, size = 0x12000, scoped, tag = 'internal scratch']
  %s0 = inlined_call_operand.hbm [shape: f32[8,512], index: 0, kind: input, shape index: {}, may-alias: {0,1}]
  %s1 = inlined_call_operand.hbm [shape: f32[8,512], index: 1, kind: output, shape index: {}, may-alias: {0,1}]
  %s2 = sld [smem:[#allocation0]]
  $region18: #{tpu_custom_call.1} parent=0
    _
  %s4 = ssub.s32 1, %s2
  %s5 = scalar_select 0, %s4, %s2
  $region1: #{tpu_custom_call.1} parent=0
    #allocation2 [shape = 'u8[16384]{0}', space=vmem, size = 0x4000, scoped, tag = 'input window, operand 0, single buffered']
    #allocation3 [shape = 's32[1]{0}', space=sflag, size = 0x4, scoped, tag = 'scoped memory for tpu_custom_call.1']
    #allocation4 [shape = 's32[1]{0}', space=sflag, size = 0x4, scoped, tag = 'scoped memory for tpu_custom_call.1']
    #allocation5 [shape = 'u8[16384]{0}', space=vmem, size = 0x4000, scoped, tag = 'output window, operand 0, single buffered']
    %6 = vsyncpa [#allocation3], 0
    %7 = vsyncpa [#allocation4], 0
    // Predicated region
    $region2: #{tpu_custom_call.1} parent=1 // pred_check
      _
    $region3: #{tpu_custom_call.1} parent=1 // pred_check_branch
      %9 = sbr.rel (0) target = $region5
    $region4: #{tpu_custom_call.1} parent=1 // pred_region
      %s11 = ssub.s32 512, 512
      %12 = vsyncadd [#allocation3], %s11
      %s14 = sshll.u32 [#allocation2], 4
      %s15 = int_to_ptr.vmem [resolvable:$true] %s14
      %17 = dma.hbm_to_vmem [thread:$0]  %s0, 512, %s15, [#allocation3]
    $region5: #{tpu_custom_call.1} parent=1 // pred_fallthru
      _
    // Predicated region
    $region6: #{tpu_custom_call.1} parent=1 // pred_check
      _
    $region7: #{tpu_custom_call.1} parent=1 // pred_check_branch
      %19 = sbr.rel (0) target = $region9
    $region8: #{tpu_custom_call.1} parent=1 // pred_region
      %20 = dma.done [#allocation3], 512
    $region9: #{tpu_custom_call.1} parent=1 // pred_fallthru
      _
    %v21 = vld [vmem:[#allocation2] sm:$0xff]
    %v22 = vld [vmem:[#allocation2 + $0x8] sm:$0xff]
    %v23 = vld [vmem:[#allocation2 + $0x10] sm:$0xff]
    %v24 = vld [vmem:[#allocation2 + $0x18] sm:$0xff]
    %25 = vst [vmem:[#allocation5] sm:$0xff] %v21
    %26 = vst [vmem:[#allocation5 + $0x8] sm:$0xff] %v22
    %27 = vst [vmem:[#allocation5 + $0x10] sm:$0xff] %v23
    %28 = vst [vmem:[#allocation5 + $0x18] sm:$0xff] %v24
    // Predicated region
    $region10: #{tpu_custom_call.1} parent=1 // pred_check
      _
    $region11: #{tpu_custom_call.1} parent=1 // pred_check_branch
      %30 = sbr.rel (0) target = $region13
    $region12: #{tpu_custom_call.1} parent=1 // pred_region
      %s32 = ssub.s32 512, 512
      %33 = vsyncadd [#allocation4], %s32
      %s35 = sshll.u32 [#allocation5], 4
      %s36 = int_to_ptr.vmem [resolvable:$true] %s35
      %38 = dma.vmem_to_hbm [thread:$0]  %s36, 512, %s1, [#allocation4]
    $region13: #{tpu_custom_call.1} parent=1 // pred_fallthru
      _
    // Predicated region
    $region14: #{tpu_custom_call.1} parent=1 // pred_check
      _
    $region15: #{tpu_custom_call.1} parent=1 // pred_check_branch
      %40 = sbr.rel (0) target = $region17
    $region16: #{tpu_custom_call.1} parent=1 // pred_region
      %41 = dma.done [#allocation4], 512
    $region17: #{tpu_custom_call.1} parent=1 // pred_fallthru
      _
    %42 = vsyncpa [#allocation3], 1
    %43 = vsyncpa [#allocation4], 1

</llo_original>
